<compile_context>
chip_gen: v7x
topology: tpu7x:2x2x1
jax: 0.10.0
libtpu: 0.0.40
codegen_flags: <defaults>
</compile_context>

<pallas_src>
import numpy as np
import jax
import jax.numpy as jnp
from jax.experimental import pallas as pl
from jax.experimental.pallas import tpu as pltpu


_LANE = 128
# Conservative per-step VMEM budget for the double-buffered x / out blocks
# (leave headroom under v7x's 32 MiB scoped default for compiler temporaries
# of the elementwise chain).
_VMEM_IO_BUDGET = 16 * 1024 * 1024


def _round_up(v, k):
    return -(-int(v) // int(k)) * int(k)


def _make_bell_kernel(m, b_int):
    """Bell membership kernel over a lane-dense (rows, batch-tile) block.

    m     : number of membership functions per state-variable column.
    b_int : optional static integer exponent (square-and-multiply on the VPU);
            None -> trainable exponent via jnp.power (exp/log on the EUP).
    """
    m = int(m)

    def kernel(x_ref, c_ref, inv_a_ref, b_ref, o_ref):
        x = x_ref[...].astype(jnp.float32)              # (n, TB)  batch on lanes
        n = x.shape[0]
        if m == 1:
            xx = x
        elif n == 1:
            xx = jnp.broadcast_to(x, (m, x.shape[1]))   # cheap sublane broadcast
        else:
            # membership-major ordering: row r = j*n + k  (membership j, column k)
            xx = jnp.concatenate([x] * m, axis=0)       # (m*n, TB)

        d = xx - c_ref[...]                             # (R, TB)
        base = d * d * inv_a_ref[...]                   # 1/a precomputed on host

        if b_int is not None:
            e = int(b_int)
            if e == 0:
                y = jnp.ones_like(base)
            else:
                y = None                                # no ones_like seed
                pw = base
                while e:                                # square-and-multiply (VPU only)
                    if e & 1:
                        y = pw if y is None else y * pw
                    e >>= 1
                    if e:
                        pw = pw * pw
        else:
            y = jnp.power(base, b_ref[...])             # exp/log on the EUP

        # Exact reciprocal (matches the PyTorch divide to a few ULP).
        o_ref[...] = pl.reciprocal(1.0 + y).astype(o_ref.dtype)

    return kernel


def _check_b_int(b, b_int):
    """Host-side guard: the fast path is only valid if every b equals b_int."""
    if b_int is None:
        return None
    b_int = int(b_int)
    if b_int < 0:
        raise ValueError("b_int fast path only supports non-negative integer exponents")
    try:
        b_host = np.asarray(b)
    except (jax.errors.TracerArrayConversionError, jax.errors.ConcretizationTypeError):
        return b_int  # traced b under jit: caller guarantees b == b_int
    if not np.all(b_host == float(b_int)):
        raise ValueError("b_int fast path requires every b coefficient to equal b_int")
    return b_int


def _bell_membership_call(x_rows, c_flat, inv_a_flat, b_flat, m, out_dtype,
                          tile_b, b_int):
    """Shared pallas_call.

    x_rows : (n, batch)   state-variable rows, batch on the lane axis.
    *_flat : (m*n, 1) f32 parameters, membership-major (row r = j*n + k).
    Returns the lane-dense (m*n, batch) membership matrix in out_dtype.
    """
    n, batch = x_rows.shape
    m = int(m)
    R = m * n

    # ---- lane-tile selection --------------------------------------------
    lanes = _round_up(batch, _LANE)
    tb = _round_up(max(int(tile_b), _LANE), _LANE)
    io_bytes_per_lane = 2 * (n * x_rows.dtype.itemsize               # 2x: double buffering
                             + R * jnp.dtype(out_dtype).itemsize)
    tb = min(tb, max(_LANE, _VMEM_IO_BUDGET // io_bytes_per_lane // _LANE * _LANE))
    tb = min(tb, lanes)
    # v7x megacore: give a 'parallel' grid at least 2 steps when there is
    # enough work to split (no effect on single-TC v5e/v6e).
    if lanes > _LANE and pl.cdiv(batch, tb) < 2:
        tb = _round_up(lanes // 2, _LANE)
    n_tiles = pl.cdiv(batch, tb)

    out = pl.pallas_call(
        _make_bell_kernel(m, b_int),
        out_shape=jax.ShapeDtypeStruct((R, batch), out_dtype),
        grid=(n_tiles,),
        in_specs=[
            pl.BlockSpec((n, tb), lambda i: (0, i)),   # x tile (lane-dense batch)
            pl.BlockSpec((R, 1), lambda i: (0, 0)),    # c      (stays resident)
            pl.BlockSpec((R, 1), lambda i: (0, 0)),    # 1/a    (stays resident)
            pl.BlockSpec((R, 1), lambda i: (0, 0)),    # b      (stays resident)
        ],
        out_specs=pl.BlockSpec((R, tb), lambda i: (0, i)),
        compiler_params=pltpu.CompilerParams(
            dimension_semantics=("parallel",)),        # megacore sharding on v7x
    )(x_rows, c_flat, inv_a_flat, b_flat)
    return out                                          # (R, batch)


def bell_fuzzy_forward(input_, a, b, c, n_memb, *, tile_b=32768, b_int=None,
                       lane_dense_output=False):
    """_BellFuzzyLayer.forward for one state-variable column (input_ of shape (batch, 1)).

    a, b, c : (1, n_memb) parameter rows, exactly as stored by the PyTorch module.
    b_int   : optional static integer exponent fast path (checked against b).
    lane_dense_output : return the kernel-native (n_memb, batch) layout and skip
        the host-side transpose (preferred when the consumer can take it and
        removes an extra HBM round trip of the output).
    """
    m = int(n_memb)
    batch, n_in = input_.shape
    if n_in != 1:
        # TODO(synk): the repeat(1, m).view(-1, m) column interleaving for n_in > 1
        # is not mapped; S-ANFIS feeds one state-variable column per layer.  Use
        # bell_fuzzy_layer1_forward to fuse several columns (each with its own
        # parameters) into a single kernel call instead.
        raise NotImplementedError("_BellFuzzyLayer kernel expects input_ of shape (batch, 1)")

    x_rows = input_.reshape(1, batch)                    # free view: batch onto lanes
    c_f = jnp.asarray(c, jnp.float32).reshape(m, 1)
    inv_a = (1.0 / jnp.asarray(a, jnp.float32)).reshape(m, 1)
    b_f = jnp.asarray(b, jnp.float32).reshape(m, 1)

    out_t = _bell_membership_call(x_rows, c_f, inv_a, b_f, m, input_.dtype,
                                  tile_b, _check_b_int(b, b_int))
    if lane_dense_output:
        return out_t                                      # (m, batch)
    return out_t.T                                        # (batch, m) — module layout


def bell_fuzzy_layer1_forward(x, a, b, c, *, tile_b=32768, b_int=None,
                              lane_dense_output=False):
    """Fused S-ANFIS layer 1: n independent _BellFuzzyLayer columns in one kernel.

    x       : (batch, n) state matrix (column k feeds layer k).
    a, b, c : (n, m) — row k holds layer k's (1, m) parameters.
    Returns (batch, n, m) with out[:, k, :] == layer_k(x[:, k:k+1]), or the
    lane-dense (m, n, batch) kernel layout if lane_dense_output=True.
    Stacking columns puts n*m rows on the sublane axis (>= 8 fills a vreg).
    """
    batch, n = x.shape
    n_p, m = a.shape
    if b.shape != (n, m) or c.shape != (n, m) or n_p != n:
        raise ValueError("a, b, c must all have shape (n, m) matching x's n columns")

    x_rows = x.T                                          # (n, batch); tiny vs the m*n*batch output
    # membership-major flattening: row r = j*n + k  <->  (membership j, column k)
    c_f = jnp.asarray(c, jnp.float32).T.reshape(m * n, 1)
    inv_a = (1.0 / jnp.asarray(a, jnp.float32)).T.reshape(m * n, 1)
    b_f = jnp.asarray(b, jnp.float32).T.reshape(m * n, 1)

    out = _bell_membership_call(x_rows, c_f, inv_a, b_f, m, x.dtype,
                                tile_b, _check_b_int(b, b_int))   # (m*n, batch)
    out = out.reshape(m, n, batch)
    if lane_dense_output:
        return out                                        # (m, n, batch)
    return out.transpose(2, 1, 0)                         # (batch, n, m)


def bell_fuzzy_reference(input_, a, b, c, n_memb):
    """Pure-JAX transcription of the exact PyTorch forward (single column)."""
    m = int(n_memb)
    x_rep = jnp.tile(input_, (1, m)).reshape(-1, m)
    return 1.0 / (1.0 + jnp.power(jnp.square(x_rep - c) / a, b))


if __name__ == "__main__":
    # Default-style parameter init matching the module's __init__ shapes:
    # torch.tensor([params['x']['value']]) with a length-m value list -> (1, m).
    n_memb = 4
    c = jnp.asarray([[-1.0, -1.0 / 3.0, 1.0 / 3.0, 1.0]], dtype=jnp.float32)  # (1, 4)
    a = jnp.asarray([[1.0, 1.0, 1.0, 1.0]], dtype=jnp.float32)                # (1, 4)
    b = jnp.asarray([[2.0, 2.0, 2.0, 2.0]], dtype=jnp.float32)                # (1, 4)

    key = jax.random.PRNGKey(0)
    batch = 8
    x = jax.random.normal(key, (batch, 1), dtype=jnp.float32)   # one state-variable column

    # 1) general (trainable-b) path, module-identical (batch, m) output
    out = jax.block_until_ready(bell_fuzzy_forward(x, a, b, c, n_memb))
    ref = bell_fuzzy_reference(x, a, b, c, n_memb)
    assert out.shape == (batch, n_memb)
    assert jnp.allclose(out, ref, rtol=1e-3, atol=1e-3)

    # 2) lane-dense output (no host transpose; preferred for downstream fusion)
    out_ld = jax.block_until_ready(
        bell_fuzzy_forward(x, a, b, c, n_memb, lane_dense_output=True))
    assert out_ld.shape == (n_memb, batch)
    assert jnp.allclose(out_ld.T, ref, rtol=1e-3, atol=1e-3)

    # 3) multi-tile grid with a partial edge block (no jnp.pad round trip)
    batch2 = 300
    x2 = jax.random.normal(jax.random.PRNGKey(0), (batch2, 1), dtype=jnp.float32)
    out2 = jax.block_until_ready(
        bell_fuzzy_forward(x2, a, b, c, n_memb, tile_b=256))
    ref2 = bell_fuzzy_reference(x2, a, b, c, n_memb)
    assert out2.shape == (batch2, n_memb)
    assert jnp.allclose(out2, ref2, rtol=1e-3, atol=1e-3)

    # 4) static integer-exponent fast path (default init has b == 2)
    out3 = jax.block_until_ready(bell_fuzzy_forward(x, a, b, c, n_memb, b_int=2))
    assert jnp.allclose(out3, ref, rtol=1e-3, atol=1e-3)

    # 5) bf16 input -> bf16 writeback (compute stays f32 inside the kernel)
    x_bf = x.astype(jnp.bfloat16)
    out_bf = jax.block_until_ready(bell_fuzzy_forward(x_bf, a, b, c, n_memb, b_int=2))
    ref_bf = bell_fuzzy_reference(x_bf.astype(jnp.float32), a, b, c, n_memb)
    assert out_bf.dtype == jnp.bfloat16
    assert jnp.allclose(out_bf.astype(jnp.float32), ref_bf, rtol=2e-2, atol=2e-2)

    # 6) fused layer-1: two state-variable columns stacked on sublanes (n*m = 8)
    n_vars, batch3 = 2, 64
    x3 = jax.random.normal(jax.random.PRNGKey(0), (batch3, n_vars), dtype=jnp.float32)
    a3 = jnp.stack([a[0], a[0] * 2.0])          # (n, m) — column 1 gets different params
    b3 = jnp.stack([b[0], b[0]])
    c3 = jnp.stack([c[0], c[0] + 0.25])
    out4 = jax.block_until_ready(bell_fuzzy_layer1_forward(x3, a3, b3, c3))
    ref4 = jnp.stack(
        [bell_fuzzy_reference(x3[:, k:k + 1], a3[k:k + 1], b3[k:k + 1],
                              c3[k:k + 1], n_memb) for k in range(n_vars)],
        axis=1)                                  # (batch, n, m)
    assert out4.shape == (batch3, n_vars, n_memb)
    assert jnp.allclose(out4, ref4, rtol=1e-3, atol=1e-3)

    print("KERNEL_OK")
</pallas_src>

<mosaic_0001>
module attributes {stable_mosaic.version = 11 : i64} {
  func.func @kernel(%arg0: i32, %arg1: memref<1x128xf32, #tpu.memory_space<vmem>>, %arg2: memref<4x1xf32, #tpu.memory_space<vmem>>, %arg3: memref<4x1xf32, #tpu.memory_space<vmem>>, %arg4: memref<4x1xf32, #tpu.memory_space<vmem>>, %arg5: memref<4x128xf32, #tpu.memory_space<vmem>>) attributes {dimension_semantics = [#tpu.dimension_semantics<parallel>], iteration_bounds = array<i64: 1>, scalar_prefetch = 0 : i64, scratch_operands = 0 : i64, tpu.core_type = #tpu.core_type<tc>, window_params = [{transform_indices = @transform_0, window_bounds = array<i64: 1, 128>}, {pipeline_mode = #tpu.pipeline_mode<synchronous>, transform_indices = @transform_1, window_bounds = array<i64: 4, 1>}, {pipeline_mode = #tpu.pipeline_mode<synchronous>, transform_indices = @transform_2, window_bounds = array<i64: 4, 1>}, {pipeline_mode = #tpu.pipeline_mode<synchronous>, transform_indices = @transform_3, window_bounds = array<i64: 4, 1>}, {transform_indices = @transform_4, window_bounds = array<i64: 4, 128>}]} {
    %c0 = arith.constant 0 : index
    %c0_0 = arith.constant 0 : index
    %0 = vector.load %arg1[%c0, %c0_0] : memref<1x128xf32, #tpu.memory_space<vmem>>, vector<1x128xf32>
    %1 = vector.shape_cast %0 : vector<1x128xf32> to vector<1x128xf32>
    %2 = vector.broadcast %1 : vector<1x128xf32> to vector<4x128xf32>
    %c0_1 = arith.constant 0 : index
    %c0_2 = arith.constant 0 : index
    %3 = vector.load %arg2[%c0_1, %c0_2] : memref<4x1xf32, #tpu.memory_space<vmem>>, vector<4x1xf32>
    %4 = vector.broadcast %3 : vector<4x1xf32> to vector<4x128xf32>
    %5 = arith.subf %2, %4 : vector<4x128xf32>
    %6 = arith.mulf %5, %5 : vector<4x128xf32>
    %c0_3 = arith.constant 0 : index
    %c0_4 = arith.constant 0 : index
    %7 = vector.load %arg3[%c0_3, %c0_4] : memref<4x1xf32, #tpu.memory_space<vmem>>, vector<4x1xf32>
    %8 = vector.broadcast %7 : vector<4x1xf32> to vector<4x128xf32>
    %9 = arith.mulf %6, %8 : vector<4x128xf32>
    %c0_5 = arith.constant 0 : index
    %c0_6 = arith.constant 0 : index
    %10 = vector.load %arg4[%c0_5, %c0_6] : memref<4x1xf32, #tpu.memory_space<vmem>>, vector<4x1xf32>
    %11 = vector.broadcast %10 : vector<4x1xf32> to vector<4x128xf32>
    %12 = math.powf %9, %11 : vector<4x128xf32>
    %cst = arith.constant 1.000000e+00 : f32
    %13 = vector.broadcast %cst : f32 to vector<4x128xf32>
    %14 = arith.addf %13, %12 : vector<4x128xf32>
    %15 = tpu.reciprocal %14 : vector<4x128xf32> -> vector<4x128xf32>
    %c0_7 = arith.constant 0 : index
    %c0_8 = arith.constant 0 : index
    %16 = vector.load %arg5[%c0_7, %c0_8] : memref<4x128xf32, #tpu.memory_space<vmem>>, vector<4x128xf32>
    tpu.vector_store %arg5[%c0_7, %c0_8], %15 {strides = array<i32>} : memref<4x128xf32, #tpu.memory_space<vmem>>, vector<4x128xf32>,
    return
  }
  func.func @transform_0(%arg0: i32) -> (i32, i32) {
    %c0_i32 = arith.constant 0 : i32
    %c0_i32_0 = arith.constant 0 : i32
    return %c0_i32, %arg0 : i32, i32
  }
  func.func @transform_1(%arg0: i32) -> (i32, i32) {
    %c0_i32 = arith.constant 0 : i32
    %c0_i32_0 = arith.constant 0 : i32
    %c0_i32_1 = arith.constant 0 : i32
    return %c0_i32, %c0_i32_0 : i32, i32
  }
  func.func @transform_2(%arg0: i32) -> (i32, i32) {
    %c0_i32 = arith.constant 0 : i32
    %c0_i32_0 = arith.constant 0 : i32
    %c0_i32_1 = arith.constant 0 : i32
    return %c0_i32, %c0_i32_0 : i32, i32
  }
  func.func @transform_3(%arg0: i32) -> (i32, i32) {
    %c0_i32 = arith.constant 0 : i32
    %c0_i32_0 = arith.constant 0 : i32
    %c0_i32_1 = arith.constant 0 : i32
    return %c0_i32, %c0_i32_0 : i32, i32
  }
  func.func @transform_4(%arg0: i32) -> (i32, i32) {
    %c0_i32 = arith.constant 0 : i32
    %c0_i32_0 = arith.constant 0 : i32
    return %c0_i32, %arg0 : i32, i32
  }
}

</mosaic_0001>

<llo_original>
// kernel: tpu_custom_call.1
$region0: #{tpu_custom_call.1}
  #allocation0 [shape = 'u32[]', space=smem, size = 0x4, offset = 0x4, fixed_abs, tag = 'smem constant byte address 0x4 - core index']
  #allocation1 [shape = 'u32[144,128]{1,0:T(1,128)}', space=vmem, size = 0x12000, scoped, tag = 'internal scratch']
  %s0 = inlined_call_operand.vmem [shape: f32[1,8], index: 0, kind: input, shape index: {}]
  %s1 = inlined_call_operand.vmem [shape: f32[4,1], index: 1, kind: input, shape index: {}]
  %s2 = inlined_call_operand.vmem [shape: f32[4,1], index: 2, kind: input, shape index: {}]
  %s3 = inlined_call_operand.vmem [shape: f32[4,1], index: 3, kind: input, shape index: {}]
  %s4 = inlined_call_operand.hbm [shape: f32[4,8], index: 4, kind: output, shape index: {}]
  %s5 = sld [smem:[#allocation0]]
  $region26: #{tpu_custom_call.1} parent=0
    _
  %s7 = ssub.s32 1, %s5
  %s8 = scalar_select 0, %s7, %s5
  $region1: #{tpu_custom_call.1} parent=0
    #allocation2 [shape = 'u8[2048]{0}', space=vmem, size = 0x800, scoped, tag = 'output window, operand 0, single buffered']
    #allocation3 [shape = 's32[1]{0}', space=sflag, size = 0x4, scoped, tag = 'scoped memory for tpu_custom_call.1']
    %9 = vsyncpa [#allocation3], 0
    // Predicated region
    $region2: #{tpu_custom_call.1} parent=1 // pred_check
      _
    $region3: #{tpu_custom_call.1} parent=1 // pred_check_branch
      %11 = sbr.rel (0) target = $region5
    $region4: #{tpu_custom_call.1} parent=1 // pred_region
      _
    $region5: #{tpu_custom_call.1} parent=1 // pred_fallthru
      _
    // Predicated region
    $region6: #{tpu_custom_call.1} parent=1 // pred_check
      _
    $region7: #{tpu_custom_call.1} parent=1 // pred_check_branch
      %13 = sbr.rel (0) target = $region9
    $region8: #{tpu_custom_call.1} parent=1 // pred_region
      _
    $region9: #{tpu_custom_call.1} parent=1 // pred_fallthru
      _
    // Predicated region
    $region10: #{tpu_custom_call.1} parent=1 // pred_check
      _
    $region11: #{tpu_custom_call.1} parent=1 // pred_check_branch
      %15 = sbr.rel (0) target = $region13
    $region12: #{tpu_custom_call.1} parent=1 // pred_region
      _
    $region13: #{tpu_custom_call.1} parent=1 // pred_fallthru
      _
    // Predicated region
    $region14: #{tpu_custom_call.1} parent=1 // pred_check
      _
    $region15: #{tpu_custom_call.1} parent=1 // pred_check_branch
      %17 = sbr.rel (0) target = $region17
    $region16: #{tpu_custom_call.1} parent=1 // pred_region
      _
    $region17: #{tpu_custom_call.1} parent=1 // pred_fallthru
      _
    %v18 = vld [vmem:[%s0] sm:$0x1]
    %v20 = vlaneseq
    %v21 = vshrl.u32 %v20, 7
    %v22 = vsub.s32 0, %v21
    %v23 = vrot.slane %v18, %v22
    %v25 = vld [vmem:[%s1] sm:$0xf]
    %27 = vset.pattern.permute.xlu0 0
    %28 = vperm.xlu0 %27, %v25
    %v29 = vpop.permute.xlu0 %28
    %v31 = vsub.f32 %v23, %v29
    %v32 = vmul.f32 %v31, %v31
    %v33 = vld [vmem:[%s2] sm:$0xf]
    %35 = vset.pattern.permute.xlu0 0
    %36 = vperm.xlu0 %35, %v33
    %v37 = vpop.permute.xlu0 %36
    %v39 = vmul.f32 %v32, %v37
    %v40 = vld [vmem:[%s3] sm:$0xf]
    %42 = vset.pattern.permute.xlu0 0
    %43 = vperm.xlu0 %42, %v40
    %v44 = vpop.permute.xlu0 %43
    %v46 = vpow.f32 %v39, %v44
    %v47 = vadd.f32 %v46, 1.0
    %v48 = vrcp.pop %v47
    %49 = vst [vmem:[#allocation2] sm:$0xf] %v48
    // Predicated region
    $region18: #{tpu_custom_call.1} parent=1 // pred_check
      _
    $region19: #{tpu_custom_call.1} parent=1 // pred_check_branch
      %51 = sbr.rel (0) target = $region21
    $region20: #{tpu_custom_call.1} parent=1 // pred_region
      %s53 = ssub.s32 64, 64
      %54 = vsyncadd [#allocation3], %s53
      %s56 = sshll.u32 [#allocation2], 4
      %s57 = int_to_ptr.vmem [resolvable:$true] %s56
      %59 = dma.vmem_to_hbm [thread:$0]  %s57, 64, %s4, [#allocation3]
    $region21: #{tpu_custom_call.1} parent=1 // pred_fallthru
      _
    // Predicated region
    $region22: #{tpu_custom_call.1} parent=1 // pred_check
      _
    $region23: #{tpu_custom_call.1} parent=1 // pred_check_branch
      %61 = sbr.rel (0) target = $region25
    $region24: #{tpu_custom_call.1} parent=1 // pred_region
      %62 = dma.done [#allocation3], 64
    $region25: #{tpu_custom_call.1} parent=1 // pred_fallthru
      _
    %63 = vsyncpa [#allocation3], 1

</llo_original>
